<compile_context>
chip_gen: v7x
topology: tpu7x:2x2x1
jax: 0.10.0
libtpu: 0.0.40
codegen_flags: <defaults>
</compile_context>

<pallas_src>
import functools

import jax
import jax.numpy as jnp
from jax.experimental import pallas as pl
from jax.experimental.pallas import tpu as pltpu


def _round_up(n, m):
    return ((n + m - 1) // m) * m


def _decoder_kernel(xh_ref, c0_ref, wg_ref, bg_ref, wfc_ref, bfc_ref,
                    out_ref, *, hp, op):
    """Single LSTM step + fc head. hp/op are the lane-padded hidden/output widths."""
    xh = xh_ref[...]                                   # (Bp, Op+Hp) bf16
    c0 = c0_ref[...]                                   # (Bp, Hp)    f32

    # Fused gate GEMM: one MXU pass, f32 accumulation -> (Bp, 4*Hp).
    gates = jnp.dot(xh, wg_ref[...],
                    preferred_element_type=jnp.float32) + bg_ref[...]

    # Lane-aligned gate slabs (hp is a multiple of 128) -> free static slices.
    i_g = jax.nn.sigmoid(gates[:, 0 * hp:1 * hp])
    f_g = jax.nn.sigmoid(gates[:, 1 * hp:2 * hp])
    g_g = jnp.tanh(gates[:, 2 * hp:3 * hp])
    o_g = jax.nn.sigmoid(gates[:, 3 * hp:4 * hp])

    # Cell update in f32 on the VPU/EUP (padded lanes stay exactly 0).
    c_new = f_g * c0 + i_g * g_g
    h_new = o_g * jnp.tanh(c_new)

    # fc head: y = h_new @ W_fc^T + b_fc -> (Bp, Op); bf16 operands, f32 acc.
    y = jnp.dot(h_new.astype(wfc_ref.dtype), wfc_ref[...],
                preferred_element_type=jnp.float32) + bfc_ref[...]

    # Lane-dense packed output slab: [ y | h_new | c_new ].
    out_ref[:, 0:op] = y
    out_ref[:, op:op + hp] = h_new
    out_ref[:, op + hp:op + 2 * hp] = c_new


def init_decoder_params(key, output_size, hidden_size):
    """PyTorch-style params: nn.LSTM / nn.Linear shapes, uniform(-1/sqrt(H), 1/sqrt(H))."""
    k = jax.random.split(key, 6)
    bound = 1.0 / jnp.sqrt(jnp.array(hidden_size, jnp.float32))
    u = lambda kk, shape: jax.random.uniform(kk, shape, jnp.float32, -bound, bound)
    return {
        "w_ih": u(k[0], (4 * hidden_size, output_size)),
        "w_hh": u(k[1], (4 * hidden_size, hidden_size)),
        "b_ih": u(k[2], (4 * hidden_size,)),
        "b_hh": u(k[3], (4 * hidden_size,)),
        "w_fc": u(k[4], (output_size, hidden_size)),
        "b_fc": u(k[5], (output_size,)),
    }


def prepare_decoder_params(params, output_size, hidden_size, weight_dtype=jnp.bfloat16):
    """One-time packing: fuse / transpose / pad weights into the kernel layout."""
    O, H = output_size, hidden_size
    Op, Hp = _round_up(O, 128), _round_up(H, 128)

    wih_t = params["w_ih"].T                     # (O, 4H)
    whh_t = params["w_hh"].T                     # (H, 4H)
    b = params["b_ih"] + params["b_hh"]          # (4H,)

    wg = jnp.zeros((Op + Hp, 4 * Hp), jnp.float32)
    bg = jnp.zeros((1, 4 * Hp), jnp.float32)
    for g in range(4):                           # PyTorch gate order: i, f, g, o
        wg = wg.at[0:O, g * Hp:g * Hp + H].set(wih_t[:, g * H:(g + 1) * H])
        wg = wg.at[Op:Op + H, g * Hp:g * Hp + H].set(whh_t[:, g * H:(g + 1) * H])
        bg = bg.at[0, g * Hp:g * Hp + H].set(b[g * H:(g + 1) * H])

    wfc = jnp.zeros((Hp, Op), jnp.float32).at[0:H, 0:O].set(params["w_fc"].T)
    bfc = jnp.zeros((1, Op), jnp.float32).at[0, 0:O].set(params["b_fc"])

    return {
        "wg": wg.astype(weight_dtype), "bg": bg,
        "wfc": wfc.astype(weight_dtype), "bfc": bfc,
        "O": O, "H": H, "Op": Op, "Hp": Hp,
    }


@functools.partial(jax.jit, static_argnames=("O", "H", "Op", "Hp"))
def _decoder_call(x, h0, c0, wg, bg, wfc, bfc, *, O, H, Op, Hp):
    """Jitted pack -> pallas_call -> unpack. x:(B,1,O), h0/c0:(1,B,H)."""
    B = x.shape[0]
    Bp = _round_up(B, 8)
    Kp = Op + Hp
    out_w = Op + 2 * Hp
    wdtype = wg.dtype

    # Pack / pad activations (tiny; padded rows & lanes are zero).
    xh = jnp.zeros((Bp, Kp), wdtype)
    xh = xh.at[:B, 0:O].set(x[:, 0, :].astype(wdtype))
    xh = xh.at[:B, Op:Op + H].set(h0[0].astype(wdtype))
    c0p = jnp.zeros((Bp, Hp), jnp.float32).at[:B, :H].set(c0[0].astype(jnp.float32))

    operands = (xh, c0p, wg, bg, wfc, bfc)

    def full_spec(shape):
        # whole-array block (block dims equal the full array dims), grid = ().
        return pl.BlockSpec(shape, lambda: (0,) * len(shape))

    out = pl.pallas_call(
        functools.partial(_decoder_kernel, hp=Hp, op=Op),
        out_shape=jax.ShapeDtypeStruct((Bp, out_w), jnp.float32),
        in_specs=[full_spec(a.shape) for a in operands],
        out_specs=full_spec((Bp, out_w)),
        compiler_params=pltpu.CompilerParams(),
    )(*operands)

    y = out[:B, 0:O].astype(x.dtype)
    h_n = out[:B, Op:Op + H].astype(h0.dtype)
    c_n = out[:B, Op + Hp:Op + Hp + H].astype(c0.dtype)
    return y[:, None, :], (h_n[None, :, :], c_n[None, :, :])


def decoder_forward(x, encoder_state, prep):
    """x: (B, 1, O); encoder_state: (h0, c0) each (num_layers=1, B, H)."""
    h0, c0 = encoder_state
    B, T, O = x.shape
    assert T == 1, "decoder takes a single time step"
    assert h0.shape[0] == 1, "num_layers=1 only"
    H = h0.shape[-1]
    assert O == prep["O"] and H == prep["H"]
    return _decoder_call(x, h0, c0, prep["wg"], prep["bg"], prep["wfc"], prep["bfc"],
                         O=prep["O"], H=prep["H"], Op=prep["Op"], Hp=prep["Hp"])


def _reference_forward(x, encoder_state, params):
    """Pure-JAX f32 reference of the PyTorch forward (correctness check)."""
    h0, c0 = encoder_state
    x2, h2, c2 = x[:, 0, :], h0[0], c0[0]
    H = h2.shape[-1]
    gates = (x2 @ params["w_ih"].T + params["b_ih"]
             + h2 @ params["w_hh"].T + params["b_hh"])
    i_g = jax.nn.sigmoid(gates[:, 0 * H:1 * H])
    f_g = jax.nn.sigmoid(gates[:, 1 * H:2 * H])
    g_g = jnp.tanh(gates[:, 2 * H:3 * H])
    o_g = jax.nn.sigmoid(gates[:, 3 * H:4 * H])
    c_new = f_g * c2 + i_g * g_g
    h_new = o_g * jnp.tanh(c_new)
    y = h_new @ params["w_fc"].T + params["b_fc"]
    return y[:, None, :], (h_new[None], c_new[None])


if __name__ == "__main__":
    batch = 2
    output_size = 4
    hidden_size = 32
    num_layers = 1

    key = jax.random.PRNGKey(0)
    kp, kx, kh, kc = jax.random.split(key, 4)

    params = init_decoder_params(kp, output_size, hidden_size)
    prep = prepare_decoder_params(params, output_size, hidden_size)  # one-time packing

    x = jax.random.normal(kx, (batch, 1, output_size), jnp.float32)
    h0 = jax.random.normal(kh, (num_layers, batch, hidden_size), jnp.float32)
    c0 = jax.random.normal(kc, (num_layers, batch, hidden_size), jnp.float32)

    out, (h_n, c_n) = decoder_forward(x, (h0, c0), prep)
    jax.block_until_ready((out, h_n, c_n))

    ref_out, (ref_h, ref_c) = _reference_forward(x, (h0, c0), params)
    assert out.shape == (batch, 1, output_size)
    assert h_n.shape == (num_layers, batch, hidden_size)
    assert c_n.shape == (num_layers, batch, hidden_size)
    # bf16 weight storage -> compare against the f32 reference with a bf16-sized tolerance.
    assert jnp.allclose(out, ref_out, atol=3e-2, rtol=3e-2)
    assert jnp.allclose(h_n, ref_h, atol=3e-2, rtol=3e-2)
    assert jnp.allclose(c_n, ref_c, atol=3e-2, rtol=3e-2)

    print("KERNEL_OK")
</pallas_src>

<mosaic_0001>
module attributes {stable_mosaic.version = 11 : i64} {
  func.func @_decoder_kernel(%arg0: memref<8x256xbf16, #tpu.memory_space<vmem>>, %arg1: memref<8x128xf32, #tpu.memory_space<vmem>>, %arg2: memref<256x512xbf16, #tpu.memory_space<vmem>>, %arg3: memref<1x512xf32, #tpu.memory_space<vmem>>, %arg4: memref<128x128xbf16, #tpu.memory_space<vmem>>, %arg5: memref<1x128xf32, #tpu.memory_space<vmem>>, %arg6: memref<8x384xf32, #tpu.memory_space<vmem>>) attributes {dimension_semantics = [], scalar_prefetch = 0 : i64, scratch_operands = 0 : i64, tpu.core_type = #tpu.core_type<tc>} {
    %c0 = arith.constant 0 : index
    %c0_0 = arith.constant 0 : index
    %0 = vector.load %arg0[%c0, %c0_0] : memref<8x256xbf16, #tpu.memory_space<vmem>>, vector<8x256xbf16>
    %c0_1 = arith.constant 0 : index
    %c0_2 = arith.constant 0 : index
    %1 = vector.load %arg1[%c0_1, %c0_2] : memref<8x128xf32, #tpu.memory_space<vmem>>, vector<8x128xf32>
    %c0_3 = arith.constant 0 : index
    %c0_4 = arith.constant 0 : index
    %2 = vector.load %arg2[%c0_3, %c0_4] : memref<256x512xbf16, #tpu.memory_space<vmem>>, vector<256x512xbf16>
    %cst = arith.constant dense<0.000000e+00> : vector<8x512xf32>
    %3 = tpu.matmul %0, %2, %cst {dimension_numbers = #tpu.dot_dimension_numbers<[1], [0], [0], [1], [0, 0, 1, 1], [], []>} : vector<8x256xbf16>, vector<256x512xbf16>, vector<8x512xf32> -> vector<8x512xf32>
    %c0_5 = arith.constant 0 : index
    %c0_6 = arith.constant 0 : index
    %4 = vector.load %arg3[%c0_5, %c0_6] : memref<1x512xf32, #tpu.memory_space<vmem>>, vector<1x512xf32>
    %5 = vector.broadcast %4 : vector<1x512xf32> to vector<8x512xf32>
    %6 = arith.addf %3, %5 : vector<8x512xf32>
    %7 = vector.extract_strided_slice %6 {offsets = [0, 0], sizes = [8, 128], strides = [1, 1]} : vector<8x512xf32> to vector<8x128xf32>
    %8 = arith.negf %7 : vector<8x128xf32>
    %9 = math.exp %8 : vector<8x128xf32>
    %cst_7 = arith.constant 1.000000e+00 : f32
    %10 = vector.broadcast %cst_7 : f32 to vector<8x128xf32>
    %11 = arith.addf %10, %9 : vector<8x128xf32>
    %12 = arith.divf %10, %11 : vector<8x128xf32>
    %13 = vector.extract_strided_slice %6 {offsets = [0, 128], sizes = [8, 128], strides = [1, 1]} : vector<8x512xf32> to vector<8x128xf32>
    %14 = arith.negf %13 : vector<8x128xf32>
    %15 = math.exp %14 : vector<8x128xf32>
    %cst_8 = arith.constant 1.000000e+00 : f32
    %16 = vector.broadcast %cst_8 : f32 to vector<8x128xf32>
    %17 = arith.addf %16, %15 : vector<8x128xf32>
    %18 = arith.divf %16, %17 : vector<8x128xf32>
    %19 = vector.extract_strided_slice %6 {offsets = [0, 256], sizes = [8, 128], strides = [1, 1]} : vector<8x512xf32> to vector<8x128xf32>
    %20 = math.tanh %19 : vector<8x128xf32>
    %21 = vector.extract_strided_slice %6 {offsets = [0, 384], sizes = [8, 128], strides = [1, 1]} : vector<8x512xf32> to vector<8x128xf32>
    %22 = arith.negf %21 : vector<8x128xf32>
    %23 = math.exp %22 : vector<8x128xf32>
    %cst_9 = arith.constant 1.000000e+00 : f32
    %24 = vector.broadcast %cst_9 : f32 to vector<8x128xf32>
    %25 = arith.addf %24, %23 : vector<8x128xf32>
    %26 = arith.divf %24, %25 : vector<8x128xf32>
    %27 = arith.mulf %18, %1 : vector<8x128xf32>
    %28 = arith.mulf %12, %20 : vector<8x128xf32>
    %29 = arith.addf %27, %28 : vector<8x128xf32>
    %30 = math.tanh %29 : vector<8x128xf32>
    %31 = arith.mulf %26, %30 : vector<8x128xf32>
    %32 = arith.truncf %31 : vector<8x128xf32> to vector<8x128xbf16>
    %c0_10 = arith.constant 0 : index
    %c0_11 = arith.constant 0 : index
    %33 = vector.load %arg4[%c0_10, %c0_11] : memref<128x128xbf16, #tpu.memory_space<vmem>>, vector<128x128xbf16>
    %cst_12 = arith.constant dense<0.000000e+00> : vector<8x128xf32>
    %34 = tpu.matmul %32, %33, %cst_12 {dimension_numbers = #tpu.dot_dimension_numbers<[1], [0], [0], [1], [0, 0, 1, 1], [], []>} : vector<8x128xbf16>, vector<128x128xbf16>, vector<8x128xf32> -> vector<8x128xf32>
    %c0_13 = arith.constant 0 : index
    %c0_14 = arith.constant 0 : index
    %35 = vector.load %arg5[%c0_13, %c0_14] : memref<1x128xf32, #tpu.memory_space<vmem>>, vector<1x128xf32>
    %36 = vector.broadcast %35 : vector<1x128xf32> to vector<8x128xf32>
    %37 = arith.addf %34, %36 : vector<8x128xf32>
    %c0_15 = arith.constant 0 : index
    %c0_16 = arith.constant 0 : index
    %38 = vector.load %arg6[%c0_15, %c0_16] : memref<8x384xf32, #tpu.memory_space<vmem>>, vector<8x128xf32>
    tpu.vector_store %arg6[%c0_15, %c0_16], %37 {strides = array<i32>} : memref<8x384xf32, #tpu.memory_space<vmem>>, vector<8x128xf32>,
    %c0_17 = arith.constant 0 : index
    %c128 = arith.constant 128 : index
    %39 = vector.load %arg6[%c0_17, %c128] : memref<8x384xf32, #tpu.memory_space<vmem>>, vector<8x128xf32>
    tpu.vector_store %arg6[%c0_17, %c128], %31 {strides = array<i32>} : memref<8x384xf32, #tpu.memory_space<vmem>>, vector<8x128xf32>,
    %c0_18 = arith.constant 0 : index
    %c256 = arith.constant 256 : index
    %40 = vector.load %arg6[%c0_18, %c256] : memref<8x384xf32, #tpu.memory_space<vmem>>, vector<8x128xf32>
    tpu.vector_store %arg6[%c0_18, %c256], %29 {strides = array<i32>} : memref<8x384xf32, #tpu.memory_space<vmem>>, vector<8x128xf32>,
    return
  }
}

</mosaic_0001>

<llo_original>
// kernel: _decoder_call.1
$region0: #{_decoder_call.1}
  #allocation0 [shape = 'u32[]', space=smem, size = 0x4, offset = 0x4, fixed_abs, tag = 'smem constant byte address 0x4 - core index']
  #allocation1 [shape = 'u32[144,128]{1,0:T(1,128)}', space=vmem, size = 0x12000, scoped, tag = 'internal scratch']
  %s0 = inlined_call_operand.vmem [shape: bf16[8,256], index: 0, kind: input, shape index: {}]
  %s1 = inlined_call_operand.vmem [shape: f32[8,128], index: 1, kind: input, shape index: {}]
  %s2 = inlined_call_operand.hbm [shape: bf16[256,512], index: 2, kind: input, shape index: {}]
  %s3 = inlined_call_operand.vmem [shape: f32[1,512], index: 3, kind: input, shape index: {}]
  %s4 = inlined_call_operand.vmem [shape: bf16[128,128], index: 4, kind: input, shape index: {}]
  %s5 = inlined_call_operand.vmem [shape: f32[1,128], index: 5, kind: input, shape index: {}]
  %s6 = inlined_call_operand.vmem [shape: f32[8,384], index: 6, kind: output, shape index: {}]
  %s7 = sld [smem:[#allocation0]]
  $region38: #{_decoder_call.1} parent=0
    _
  %s9 = ssub.s32 1, %s7
  %s10 = scalar_select 0, %s9, %s7
  $region1: #{_decoder_call.1} parent=0
    #allocation2 [shape = 'u8[262144]{0}', space=vmem, size = 0x40000, scoped, tag = 'input window, operand 2, single buffered']
    #allocation3 [shape = 's32[1]{0}', space=sflag, size = 0x4, scoped, tag = 'scoped memory for _decoder_call.1']
    %11 = vsyncpa [#allocation3], 0
    // Predicated region
    $region2: #{_decoder_call.1} parent=1 // pred_check
      _
    $region3: #{_decoder_call.1} parent=1 // pred_check_branch
      %13 = sbr.rel (0) target = $region5
    $region4: #{_decoder_call.1} parent=1 // pred_region
      _
    $region5: #{_decoder_call.1} parent=1 // pred_fallthru
      _
    // Predicated region
    $region6: #{_decoder_call.1} parent=1 // pred_check
      _
    $region7: #{_decoder_call.1} parent=1 // pred_check_branch
      %15 = sbr.rel (0) target = $region9
    $region8: #{_decoder_call.1} parent=1 // pred_region
      _
    $region9: #{_decoder_call.1} parent=1 // pred_fallthru
      _
    // Predicated region
    $region10: #{_decoder_call.1} parent=1 // pred_check
      _
    $region11: #{_decoder_call.1} parent=1 // pred_check_branch
      %17 = sbr.rel (0) target = $region13
    $region12: #{_decoder_call.1} parent=1 // pred_region
      %s19 = ssub.s32 8192, 8192
      %20 = vsyncadd [#allocation3], %s19
      %s21 = sshll.u32 [#allocation2], 4
      %s22 = int_to_ptr.vmem [resolvable:$true] %s21
      %27 = dma.hbm_to_vmem [thread:$0]  %s2, 8192, %s22, [#allocation3], 256, 256, 16
    $region13: #{_decoder_call.1} parent=1 // pred_fallthru
      _
    // Predicated region
    $region14: #{_decoder_call.1} parent=1 // pred_check
      _
    $region15: #{_decoder_call.1} parent=1 // pred_check_branch
      %29 = sbr.rel (0) target = $region17
    $region16: #{_decoder_call.1} parent=1 // pred_region
      _
    $region17: #{_decoder_call.1} parent=1 // pred_fallthru
      _
    // Predicated region
    $region18: #{_decoder_call.1} parent=1 // pred_check
      _
    $region19: #{_decoder_call.1} parent=1 // pred_check_branch
      %31 = sbr.rel (0) target = $region21
    $region20: #{_decoder_call.1} parent=1 // pred_region
      _
    $region21: #{_decoder_call.1} parent=1 // pred_fallthru
      _
    // Predicated region
    $region22: #{_decoder_call.1} parent=1 // pred_check
      _
    $region23: #{_decoder_call.1} parent=1 // pred_check_branch
      %33 = sbr.rel (0) target = $region25
    $region24: #{_decoder_call.1} parent=1 // pred_region
      _
    $region25: #{_decoder_call.1} parent=1 // pred_fallthru
      _
    // Predicated region
    $region26: #{_decoder_call.1} parent=1 // pred_check
      _
    $region27: #{_decoder_call.1} parent=1 // pred_check_branch
      %35 = sbr.rel (0) target = $region29
    $region28: #{_decoder_call.1} parent=1 // pred_region
      %36 = dma.done [#allocation3], 8192
    $region29: #{_decoder_call.1} parent=1 // pred_fallthru
      _
    %v38 = vld [vmem:[%s0] sm:$0xff]
    %v39 = vld [vmem:[%s1] sm:$0xff]
    %v40 = vld [vmem:[#allocation2] sm:$0xff]
    %v41 = vld [vmem:[#allocation2 + $0x8] sm:$0xff]
    %v42 = vld [vmem:[#allocation2 + $0x10] sm:$0xff]
    %v43 = vld [vmem:[#allocation2 + $0x18] sm:$0xff]
    %v44 = vld [vmem:[#allocation2 + $0x20] sm:$0xff]
    %v45 = vld [vmem:[#allocation2 + $0x28] sm:$0xff]
    %v46 = vld [vmem:[#allocation2 + $0x30] sm:$0xff]
    %v47 = vld [vmem:[#allocation2 + $0x38] sm:$0xff]
    %v48 = vld [vmem:[#allocation2 + $0x40] sm:$0xff]
    %v49 = vld [vmem:[#allocation2 + $0x48] sm:$0xff]
    %v50 = vld [vmem:[#allocation2 + $0x50] sm:$0xff]
    %v51 = vld [vmem:[#allocation2 + $0x58] sm:$0xff]
    %v52 = vld [vmem:[#allocation2 + $0x60] sm:$0xff]
    %v53 = vld [vmem:[#allocation2 + $0x68] sm:$0xff]
    %v54 = vld [vmem:[#allocation2 + $0x70] sm:$0xff]
    %v55 = vld [vmem:[#allocation2 + $0x78] sm:$0xff]
    %v56 = vld [vmem:[#allocation2 + $0x80] sm:$0xff]
    %v57 = vld [vmem:[#allocation2 + $0x88] sm:$0xff]
    %v58 = vld [vmem:[#allocation2 + $0x90] sm:$0xff]
    %v59 = vld [vmem:[#allocation2 + $0x98] sm:$0xff]
    %v60 = vld [vmem:[#allocation2 + $0xa0] sm:$0xff]
    %v61 = vld [vmem:[#allocation2 + $0xa8] sm:$0xff]
    %v62 = vld [vmem:[#allocation2 + $0xb0] sm:$0xff]
    %v63 = vld [vmem:[#allocation2 + $0xb8] sm:$0xff]
    %v64 = vld [vmem:[#allocation2 + $0xc0] sm:$0xff]
    %v65 = vld [vmem:[#allocation2 + $0xc8] sm:$0xff]
    %v66 = vld [vmem:[#allocation2 + $0xd0] sm:$0xff]
    %v67 = vld [vmem:[#allocation2 + $0xd8] sm:$0xff]
    %v68 = vld [vmem:[#allocation2 + $0xe0] sm:$0xff]
    %v69 = vld [vmem:[#allocation2 + $0xe8] sm:$0xff]
    %v70 = vld [vmem:[#allocation2 + $0xf0] sm:$0xff]
    %v71 = vld [vmem:[#allocation2 + $0xf8] sm:$0xff]
    %v72 = vld [vmem:[#allocation2 + $0x100] sm:$0xff]
    %v73 = vld [vmem:[#allocation2 + $0x108] sm:$0xff]
    %v74 = vld [vmem:[#allocation2 + $0x110] sm:$0xff]
    %v75 = vld [vmem:[#allocation2 + $0x118] sm:$0xff]
    %v76 = vld [vmem:[#allocation2 + $0x120] sm:$0xff]
    %v77 = vld [vmem:[#allocation2 + $0x128] sm:$0xff]
    %v78 = vld [vmem:[#allocation2 + $0x130] sm:$0xff]
    %v79 = vld [vmem:[#allocation2 + $0x138] sm:$0xff]
    %v80 = vld [vmem:[#allocation2 + $0x140] sm:$0xff]
    %v81 = vld [vmem:[#allocation2 + $0x148] sm:$0xff]
    %v82 = vld [vmem:[#allocation2 + $0x150] sm:$0xff]
    %v83 = vld [vmem:[#allocation2 + $0x158] sm:$0xff]
    %v84 = vld [vmem:[#allocation2 + $0x160] sm:$0xff]
    %v85 = vld [vmem:[#allocation2 + $0x168] sm:$0xff]
    %v86 = vld [vmem:[#allocation2 + $0x170] sm:$0xff]
    %v87 = vld [vmem:[#allocation2 + $0x178] sm:$0xff]
    %v88 = vld [vmem:[#allocation2 + $0x180] sm:$0xff]
    %v89 = vld [vmem:[#allocation2 + $0x188] sm:$0xff]
    %v90 = vld [vmem:[#allocation2 + $0x190] sm:$0xff]
    %v91 = vld [vmem:[#allocation2 + $0x198] sm:$0xff]
    %v92 = vld [vmem:[#allocation2 + $0x1a0] sm:$0xff]
    %v93 = vld [vmem:[#allocation2 + $0x1a8] sm:$0xff]
    %v94 = vld [vmem:[#allocation2 + $0x1b0] sm:$0xff]
    %v95 = vld [vmem:[#allocation2 + $0x1b8] sm:$0xff]
    %v96 = vld [vmem:[#allocation2 + $0x1c0] sm:$0xff]
    %v97 = vld [vmem:[#allocation2 + $0x1c8] sm:$0xff]
    %v98 = vld [vmem:[#allocation2 + $0x1d0] sm:$0xff]
    %v99 = vld [vmem:[#allocation2 + $0x1d8] sm:$0xff]
    %v100 = vld [vmem:[#allocation2 + $0x1e0] sm:$0xff]
    %v101 = vld [vmem:[#allocation2 + $0x1e8] sm:$0xff]
    %v102 = vld [vmem:[#allocation2 + $0x1f0] sm:$0xff]
    %v103 = vld [vmem:[#allocation2 + $0x1f8] sm:$0xff]
    %v104 = vld [vmem:[%s3] sm:$0xf]
    %v106 = vlaneseq
    %v107 = vshrl.u32 %v106, 7
    %v108 = vsub.s32 0, %v107
    %v109 = vrot.slane %v104, %v108
    %v110 = vlaneseq
    %v111 = vshrl.u32 %v110, 7
    %v112 = vsub.s32 1, %v111
    %v113 = vrot.slane %v104, %v112
    %v114 = vlaneseq
    %v115 = vshrl.u32 %v114, 7
    %v116 = vsub.s32 2, %v115
    %v117 = vrot.slane %v104, %v116
    %v118 = vlaneseq
    %v119 = vshrl.u32 %v118, 7
    %v120 = vsub.s32 3, %v119
    %v121 = vrot.slane %v104, %v120
    %v127 = vunpack.c.l.b16 %v38
    %v128 = vunpack.c.h.b16 %v38
    %v129 = vpack.c.b16 %v127, %v127
    %v130 = vpack.c.b16 %v128, %v128
    %v197 = vunpack.c.l.b16 %v40
    %v198 = vunpack.c.h.b16 %v40
    %v199 = vunpack.c.l.b16 %v41
    %v200 = vunpack.c.h.b16 %v41
    %v201 = vunpack.c.l.b16 %v42
    %v202 = vunpack.c.h.b16 %v42
    %v203 = vunpack.c.l.b16 %v43
    %v204 = vunpack.c.h.b16 %v43
    %v205 = vunpack.c.l.b16 %v44
    %v206 = vunpack.c.h.b16 %v44
    %v207 = vunpack.c.l.b16 %v45
    %v208 = vunpack.c.h.b16 %v45
    %v209 = vunpack.c.l.b16 %v46
    %v210 = vunpack.c.h.b16 %v46
    %v211 = vunpack.c.l.b16 %v47
    %v212 = vunpack.c.h.b16 %v47
    %v213 = vunpack.c.l.b16 %v48
    %v214 = vunpack.c.h.b16 %v48
    %v215 = vunpack.c.l.b16 %v49
    %v216 = vunpack.c.h.b16 %v49
    %v217 = vunpack.c.l.b16 %v50
    %v218 = vunpack.c.h.b16 %v50
    %v219 = vunpack.c.l.b16 %v51
    %v220 = vunpack.c.h.b16 %v51
    %v221 = vunpack.c.l.b16 %v52
    %v222 = vunpack.c.h.b16 %v52
    %v223 = vunpack.c.l.b16 %v53
    %v224 = vunpack.c.h.b16 %v53
    %v225 = vunpack.c.l.b16 %v54
    %v226 = vunpack.c.h.b16 %v54
    %v227 = vunpack.c.l.b16 %v55
    %v228 = vunpack.c.h.b16 %v55
    %v229 = vunpack.c.l.b16 %v56
    %v230 = vunpack.c.h.b16 %v56
    %v231 = vunpack.c.l.b16 %v57
    %v232 = vunpack.c.h.b16 %v57
    %v233 = vunpack.c.l.b16 %v58
    %v234 = vunpack.c.h.b16 %v58
    %v235 = vunpack.c.l.b16 %v59
    %v236 = vunpack.c.h.b16 %v59
    %v237 = vunpack.c.l.b16 %v60
    %v238 = vunpack.c.h.b16 %v60
    %v239 = vunpack.c.l.b16 %v61
    %v240 = vunpack.c.h.b16 %v61
    %v241 = vunpack.c.l.b16 %v62
    %v242 = vunpack.c.h.b16 %v62
    %v243 = vunpack.c.l.b16 %v63
    %v244 = vunpack.c.h.b16 %v63
    %v245 = vunpack.c.l.b16 %v64
    %v246 = vunpack.c.h.b16 %v64
    %v247 = vunpack.c.l.b16 %v65
    %v248 = vunpack.c.h.b16 %v65
    %v249 = vunpack.c.l.b16 %v66
    %v250 = vunpack.c.h.b16 %v66
    %v251 = vunpack.c.l.b16 %v67
    %v252 = vunpack.c.h.b16 %v67
    %v253 = vunpack.c.l.b16 %v68
    %v254 = vunpack.c.h.b16 %v68
    %v255 = vunpack.c.l.b16 %v69
    %v256 = vunpack.c.h.b16 %v69
    %v257 = vunpack.c.l.b16 %v70
    %v258 = vunpack.c.h.b16 %v70
    %v259 = vunpack.c.l.b16 %v71
    %v260 = vunpack.c.h.b16 %v71
    %v261 = vunpack.c.l.b16 %v72
    %v262 = vunpack.c.h.b16 %v72
    %v263 = vunpack.c.l.b16 %v73
    %v264 = vunpack.c.h.b16 %v73
    %v265 = vunpack.c.l.b16 %v74
    %v266 = vunpack.c.h.b16 %v74
    %v267 = vunpack.c.l.b16 %v75
    %v268 = vunpack.c.h.b16 %v75
    %v269 = vunpack.c.l.b16 %v76
    %v270 = vunpack.c.h.b16 %v76
    %v271 = vunpack.c.l.b16 %v77
    %v272 = vunpack.c.h.b16 %v77
    %v273 = vunpack.c.l.b16 %v78
    %v274 = vunpack.c.h.b16 %v78
    %v275 = vunpack.c.l.b16 %v79
    %v276 = vunpack.c.h.b16 %v79
    %v277 = vunpack.c.l.b16 %v80
    %v278 = vunpack.c.h.b16 %v80
    %v279 = vunpack.c.l.b16 %v81
    %v280 = vunpack.c.h.b16 %v81
    %v281 = vunpack.c.l.b16 %v82
    %v282 = vunpack.c.h.b16 %v82
    %v283 = vunpack.c.l.b16 %v83
    %v284 = vunpack.c.h.b16 %v83
    %v285 = vunpack.c.l.b16 %v84
    %v286 = vunpack.c.h.b16 %v84
    %v287 = vunpack.c.l.b16 %v85
    %v288 = vunpack.c.h.b16 %v85
    %v289 = vunpack.c.l.b16 %v86
    %v290 = vunpack.c.h.b16 %v86
    %v291 = vunpack.c.l.b16 %v87
    %v292 = vunpack.c.h.b16 %v87
    %v293 = vunpack.c.l.b16 %v88
    %v294 = vunpack.c.h.b16 %v88
    %v295 = vunpack.c.l.b16 %v89
    %v296 = vunpack.c.h.b16 %v89
    %v297 = vunpack.c.l.b16 %v90
    %v298 = vunpack.c.h.b16 %v90
    %v299 = vunpack.c.l.b16 %v91
    %v300 = vunpack.c.h.b16 %v91
    %v301 = vunpack.c.l.b16 %v92
    %v302 = vunpack.c.h.b16 %v92
    %v303 = vunpack.c.l.b16 %v93
    %v304 = vunpack.c.h.b16 %v93
    %v305 = vunpack.c.l.b16 %v94
    %v306 = vunpack.c.h.b16 %v94
    %v307 = vunpack.c.l.b16 %v95
    %v308 = vunpack.c.h.b16 %v95
    %v309 = vunpack.c.l.b16 %v96
    %v310 = vunpack.c.h.b16 %v96
    %v311 = vunpack.c.l.b16 %v97
    %v312 = vunpack.c.h.b16 %v97
    %v313 = vunpack.c.l.b16 %v98
    %v314 = vunpack.c.h.b16 %v98
    %v315 = vunpack.c.l.b16 %v99
    %v316 = vunpack.c.h.b16 %v99
    %v317 = vunpack.c.l.b16 %v100
    %v318 = vunpack.c.h.b16 %v100
    %v319 = vunpack.c.l.b16 %v101
    %v320 = vunpack.c.h.b16 %v101
    %v321 = vunpack.c.l.b16 %v102
    %v322 = vunpack.c.h.b16 %v102
    %v323 = vunpack.c.l.b16 %v103
    %v324 = vunpack.c.h.b16 %v103
    %v325 = vpack.c.b16 %v201, %v197
    %v326 = vpack.c.b16 %v202, %v198
    %v327 = vpack.c.b16 %v203, %v199
    %v328 = vpack.c.b16 %v204, %v200
    %v329 = vpack.c.b16 %v209, %v205
    %v330 = vpack.c.b16 %v210, %v206
    %v331 = vpack.c.b16 %v211, %v207
    %v332 = vpack.c.b16 %v212, %v208
    %v333 = vpack.c.b16 %v217, %v213
    %v334 = vpack.c.b16 %v218, %v214
    %v335 = vpack.c.b16 %v219, %v215
    %v336 = vpack.c.b16 %v220, %v216
    %v337 = vpack.c.b16 %v225, %v221
    %v338 = vpack.c.b16 %v226, %v222
    %v339 = vpack.c.b16 %v227, %v223
    %v340 = vpack.c.b16 %v228, %v224
    %v341 = vpack.c.b16 %v233, %v229
    %v342 = vpack.c.b16 %v234, %v230
    %v343 = vpack.c.b16 %v235, %v231
    %v344 = vpack.c.b16 %v236, %v232
    %v345 = vpack.c.b16 %v241, %v237
    %v346 = vpack.c.b16 %v242, %v238
    %v347 = vpack.c.b16 %v243, %v239
    %v348 = vpack.c.b16 %v244, %v240
    %v349 = vpack.c.b16 %v249, %v245
    %v350 = vpack.c.b16 %v250, %v246
    %v351 = vpack.c.b16 %v251, %v247
    %v352 = vpack.c.b16 %v252, %v248
    %v353 = vpack.c.b16 %v257, %v253
    %v354 = vpack.c.b16 %v258, %v254
    %v355 = vpack.c.b16 %v259, %v255
    %v356 = vpack.c.b16 %v260, %v256
    %v357 = vpack.c.b16 %v265, %v261
    %v358 = vpack.c.b16 %v266, %v262
    %v359 = vpack.c.b16 %v267, %v263
    %v360 = vpack.c.b16 %v268, %v264
    %v361 = vpack.c.b16 %v273, %v269
    %v362 = vpack.c.b16 %v274, %v270
    %v363 = vpack.c.b16 %v275, %v271
    %v364 = vpack.c.b16 %v276, %v272
    %v365 = vpack.c.b16 %v281, %v277
    %v366 = vpack.c.b16 %v282, %v278
    %v367 = vpack.c.b16 %v283, %v279
    %v368 = vpack.c.b16 %v284, %v280
    %v369 = vpack.c.b16 %v289, %v285
    %v370 = vpack.c.b16 %v290, %v286
    %v371 = vpack.c.b16 %v291, %v287
    %v372 = vpack.c.b16 %v292, %v288
    %v373 = vpack.c.b16 %v297, %v293
    %v374 = vpack.c.b16 %v298, %v294
    %v375 = vpack.c.b16 %v299, %v295
    %v376 = vpack.c.b16 %v300, %v296
    %v377 = vpack.c.b16 %v305, %v301
    %v378 = vpack.c.b16 %v306, %v302
    %v379 = vpack.c.b16 %v307, %v303
    %v380 = vpack.c.b16 %v308, %v304
    %v381 = vpack.c.b16 %v313, %v309
    %v382 = vpack.c.b16 %v314, %v310
    %v383 = vpack.c.b16 %v315, %v311
    %v384 = vpack.c.b16 %v316, %v312
    %v385 = vpack.c.b16 %v321, %v317
    %v386 = vpack.c.b16 %v322, %v318
    %v387 = vpack.c.b16 %v323, %v319
    %v388 = vpack.c.b16 %v324, %v320
    %453 = vmatprep.subr.bf16.mxu0 %v326
    %454 = vmatpush1.bf16.msra.mxu0 %v325
    %455 = vmatprep.subr.bf16.mxu0 %v330
    %456 = vmatpush1.bf16.msra.mxu0 %v329
    %457 = vmatprep.subr.bf16.mxu0 %v334
    %458 = vmatpush1.bf16.msra.mxu0 %v333
    %459 = vmatprep.subr.bf16.mxu0 %v338
    %460 = vmatpush1.bf16.msra.mxu0 %v337
    %461 = vmatprep.subr.bf16.mxu0 %v342
    %462 = vmatpush1.bf16.msra.mxu0 %v341
    %463 = vmatprep.subr.bf16.mxu0 %v346
    %464 = vmatpush1.bf16.msra.mxu0 %v345
    %465 = vmatprep.subr.bf16.mxu0 %v350
    %466 = vmatpush1.bf16.msra.mxu0 %v349
    %467 = vmatprep.subr.bf16.mxu0 %v354
    %468 = vmatpush1.bf16.msra.mxu0 %v353
    %469 = vmatprep.subr.bf16.mxu0 %v358
    %470 = vmatpush1.bf16.msra.mxu0 %v357
    %471 = vmatprep.subr.bf16.mxu0 %v362
    %472 = vmatpush1.bf16.msra.mxu0 %v361
    %473 = vmatprep.subr.bf16.mxu0 %v366
    %474 = vmatpush1.bf16.msra.mxu0 %v365
    %475 = vmatprep.subr.bf16.mxu0 %v370
    %476 = vmatpush1.bf16.msra.mxu0 %v369
    %477 = vmatprep.subr.bf16.mxu0 %v374
    %478 = vmatpush1.bf16.msra.mxu0 %v373
    %479 = vmatprep.subr.bf16.mxu0 %v378
    %480 = vmatpush1.bf16.msra.mxu0 %v377
    %481 = vmatprep.subr.bf16.mxu0 %v382
    %482 = vmatpush1.bf16.msra.mxu0 %v381
    %483 = vmatprep.subr.bf16.mxu0 %v386
    %484 = vmatpush1.bf16.msra.mxu0 %v385
    %485 = vmatprep.mubr.bf16.mxu0 %v130
    %486 = vmatmul.mubr.bf16.gmra.mrb[0].mxu0 %v129
    %v487 = vpop.f32.mrb[0].mxu0
    %v488 = vadd.f32 %v109, %v487
    %v489 = vpop.f32.mrb[0].mxu0
    %v490 = vadd.f32 %v113, %v489
    %v491 = vpop.f32.mrb[0].mxu0
    %v492 = vpop.f32.mrb[0].mxu0
    %493 = vdwg.mxu0
    %494 = vmatprep.subr.bf16.mxu0 %v328
    %495 = vmatpush1.bf16.msra.mxu0 %v327
    %496 = vmatprep.subr.bf16.mxu0 %v332
    %497 = vmatpush1.bf16.msra.mxu0 %v331
    %498 = vmatprep.subr.bf16.mxu0 %v336
    %499 = vmatpush1.bf16.msra.mxu0 %v335
    %500 = vmatprep.subr.bf16.mxu0 %v340
    %501 = vmatpush1.bf16.msra.mxu0 %v339
    %502 = vmatprep.subr.bf16.mxu0 %v344
    %503 = vmatpush1.bf16.msra.mxu0 %v343
    %504 = vmatprep.subr.bf16.mxu0 %v348
    %505 = vmatpush1.bf16.msra.mxu0 %v347
    %506 = vmatprep.subr.bf16.mxu0 %v352
    %507 = vmatpush1.bf16.msra.mxu0 %v351
    %508 = vmatprep.subr.bf16.mxu0 %v356
    %509 = vmatpush1.bf16.msra.mxu0 %v355
    %510 = vmatprep.subr.bf16.mxu0 %v360
    %511 = vmatpush1.bf16.msra.mxu0 %v359
    %512 = vmatprep.subr.bf16.mxu0 %v364
    %513 = vmatpush1.bf16.msra.mxu0 %v363
    %514 = vmatprep.subr.bf16.mxu0 %v368
    %515 = vmatpush1.bf16.msra.mxu0 %v367
    %516 = vmatprep.subr.bf16.mxu0 %v372
    %517 = vmatpush1.bf16.msra.mxu0 %v371
    %518 = vmatprep.subr.bf16.mxu0 %v376
    %519 = vmatpush1.bf16.msra.mxu0 %v375
    %520 = vmatprep.subr.bf16.mxu0 %v380
    %521 = vmatpush1.bf16.msra.mxu0 %v379
    %522 = vmatprep.subr.bf16.mxu0 %v384
    %523 = vmatpush1.bf16.msra.mxu0 %v383
    %524 = vmatprep.subr.bf16.mxu0 %v388
    %525 = vmatpush1.bf16.msra.mxu0 %v387
    %526 = vmatprep.mubr.bf16.mxu0 %v130
    %527 = vmatmul.mubr.bf16.gmra.mrb[0].mxu0 %v129
    %v528 = vpop.f32.mrb[0].mxu0
    %v529 = vadd.f32 %v117, %v528
    %v530 = vpop.f32.mrb[0].mxu0
    %v531 = vadd.f32 %v121, %v530
    %v532 = vpop.f32.mrb[0].mxu0
    %v533 = vpop.f32.mrb[0].mxu0
    %534 = vdwg.mxu0
    %v535 = vxor.u32 %v488, 2147483648
    %v536 = vmul.f32 %v535, 1.442695
    %v537 = vpow.pop %v536
    %v538 = vadd.f32 %v537, 1.0
    %v539 = vrcp.pop %v538
    %v540 = vmul.f32 1.0, %v539
    %v541 = vxor.u32 %v490, 2147483648
    %v542 = vmul.f32 %v541, 1.442695
    %v543 = vpow.pop %v542
    %v544 = vadd.f32 %v543, 1.0
    %v545 = vrcp.pop %v544
    %v546 = vmul.f32 1.0, %v545
    %v547 = vtanh.pop %v529
    %v548 = vxor.u32 %v531, 2147483648
    %v549 = vmul.f32 %v548, 1.442695
    %v550 = vpow.pop %v549
    %v551 = vadd.f32 %v550, 1.0
    %v552 = vrcp.pop %v551
    %v553 = vmul.f32 1.0, %v552
    %v554 = vmul.f32 %v546, %v39
    %v555 = vmul.f32 %v540, %v547
    %v556 = vadd.f32 %v554, %v555
    %v557 = vtanh.pop %v556
    %v558 = vmul.f32 %v553, %v557
    %v559 = vpack.c.bf16 %v558, %v558
    %v560 = vld [vmem:[%s4] sm:$0xf]
    %v561 = vld [vmem:[%s4 + $0x4] sm:$0xf]
    %v562 = vld [vmem:[%s4 + $0x8] sm:$0xf]
    %v563 = vld [vmem:[%s4 + $0xc] sm:$0xf]
    %v564 = vld [vmem:[%s4 + $0x10] sm:$0xf]
    %v565 = vld [vmem:[%s4 + $0x14] sm:$0xf]
    %v566 = vld [vmem:[%s4 + $0x18] sm:$0xf]
    %v567 = vld [vmem:[%s4 + $0x1c] sm:$0xf]
    %v568 = vld [vmem:[%s4 + $0x20] sm:$0xf]
    %v569 = vld [vmem:[%s4 + $0x24] sm:$0xf]
    %v570 = vld [vmem:[%s4 + $0x28] sm:$0xf]
    %v571 = vld [vmem:[%s4 + $0x2c] sm:$0xf]
    %v572 = vld [vmem:[%s4 + $0x30] sm:$0xf]
    %v573 = vld [vmem:[%s4 + $0x34] sm:$0xf]
    %v574 = vld [vmem:[%s4 + $0x38] sm:$0xf]
    %v575 = vld [vmem:[%s4 + $0x3c] sm:$0xf]
    %v576 = vld [vmem:[%s5] sm:$0x1]
    %v578 = vlaneseq
    %v579 = vshrl.u32 %v578, 7
    %v580 = vsub.s32 0, %v579
    %v581 = vrot.slane %v576, %v580
    %v599 = vunpack.c.l.b16 %v560
    %v600 = vunpack.c.l.b16 %v561
    %v601 = vunpack.c.l.b16 %v562
    %v602 = vunpack.c.l.b16 %v563
    %v603 = vunpack.c.l.b16 %v564
    %v604 = vunpack.c.l.b16 %v565
    %v605 = vunpack.c.l.b16 %v566
    %v606 = vunpack.c.l.b16 %v567
    %v607 = vunpack.c.l.b16 %v568
    %v608 = vunpack.c.l.b16 %v569
    %v609 = vunpack.c.l.b16 %v570
    %v610 = vunpack.c.l.b16 %v571
    %v611 = vunpack.c.l.b16 %v572
    %v612 = vunpack.c.l.b16 %v573
    %v613 = vunpack.c.l.b16 %v574
    %v614 = vunpack.c.l.b16 %v575
    %v615 = vpack.c.b16 %v600, %v599
    %v616 = vpack.c.b16 %v602, %v601
    %v617 = vpack.c.b16 %v604, %v603
    %v618 = vpack.c.b16 %v606, %v605
    %v619 = vpack.c.b16 %v608, %v607
    %v620 = vpack.c.b16 %v610, %v609
    %v621 = vpack.c.b16 %v612, %v611
    %v622 = vpack.c.b16 %v614, %v613
    %631 = vmatprep.subr.bf16.mxu0 0
    %632 = vmatpush1.bf16.msra.mxu0 %v615
    %633 = vmatprep.subr.bf16.mxu0 0
    %634 = vmatpush1.bf16.msra.mxu0 %v616
    %635 = vmatprep.subr.bf16.mxu0 0
    %636 = vmatpush1.bf16.msra.mxu0 %v617
    %637 = vmatprep.subr.bf16.mxu0 0
    %638 = vmatpush1.bf16.msra.mxu0 %v618
    %639 = vmatprep.subr.bf16.mxu0 0
    %640 = vmatpush1.bf16.msra.mxu0 %v619
    %641 = vmatprep.subr.bf16.mxu0 0
    %642 = vmatpush1.bf16.msra.mxu0 %v620
    %643 = vmatprep.subr.bf16.mxu0 0
    %644 = vmatpush1.bf16.msra.mxu0 %v621
    %645 = vmatprep.subr.bf16.mxu0 0
    %646 = vmatpush1.bf16.msra.mxu0 %v622
    %647 = vmatprep.subr.bf16.mxu0 0
    %648 = vmatpush1.bf16.msra.mxu0 0
    %649 = vmatprep.subr.bf16.mxu0 0
    %650 = vmatpush1.bf16.msra.mxu0 0
    %651 = vmatprep.subr.bf16.mxu0 0
    %652 = vmatpush1.bf16.msra.mxu0 0
    %653 = vmatprep.subr.bf16.mxu0 0
    %654 = vmatpush1.bf16.msra.mxu0 0
    %655 = vmatprep.subr.bf16.mxu0 0
    %656 = vmatpush1.bf16.msra.mxu0 0
    %657 = vmatprep.subr.bf16.mxu0 0
    %658 = vmatpush1.bf16.msra.mxu0 0
    %659 = vmatprep.subr.bf16.mxu0 0
    %660 = vmatpush1.bf16.msra.mxu0 0
    %661 = vmatprep.subr.bf16.mxu0 0
    %662 = vmatpush1.bf16.msra.mxu0 0
    %663 = vmatprep.mubr.bf16.mxu0 0
    %664 = vmatmul.mubr.bf16.gmra.mrb[0].mxu0 %v559
    %v665 = vpop.f32.mrb[0].mxu0
    %v666 = vadd.f32 %v581, %v665
    %v667 = vpop.f32.mrb[0].mxu0
    %v668 = vpop.f32.mrb[0].mxu0
    %v669 = vpop.f32.mrb[0].mxu0
    %670 = vdwg.mxu0
    %671 = vst [vmem:[%s6] sm:$0xff] %v666
    %672 = vst [vmem:[%s6 + $0x8] sm:$0xff] %v558
    %673 = vst [vmem:[%s6 + $0x10] sm:$0xff] %v556
    // Predicated region
    $region30: #{_decoder_call.1} parent=1 // pred_check
      _
    $region31: #{_decoder_call.1} parent=1 // pred_check_branch
      %675 = sbr.rel (0) target = $region33
    $region32: #{_decoder_call.1} parent=1 // pred_region
      _
    $region33: #{_decoder_call.1} parent=1 // pred_fallthru
      _
    // Predicated region
    $region34: #{_decoder_call.1} parent=1 // pred_check
      _
    $region35: #{_decoder_call.1} parent=1 // pred_check_branch
      %677 = sbr.rel (0) target = $region37
    $region36: #{_decoder_call.1} parent=1 // pred_region
      _
    $region37: #{_decoder_call.1} parent=1 // pred_fallthru
      _
    %678 = vsyncpa [#allocation3], 1

</llo_original>
